<compile_context>
chip_gen: v7x
topology: tpu7x:2x2x1
jax: 0.10.0
libtpu: 0.0.40
codegen_flags: <defaults>
</compile_context>

<pallas_src>
import jax
import jax.numpy as jnp
from jax.experimental import pallas as pl
from jax.experimental.pallas import tpu as pltpu

SELU_ALPHA = 1.6732632423543772
SELU_SCALE = 1.0507009873554805

_LANE = 128
_SUBLANE = 8


def _round_up(n, m):
    return ((n + m - 1) // m) * m


def _selu(x):
    # SELU(x) = scale * (max(0, x) + min(0, alpha * (exp(x) - 1)))   (f32)
    return SELU_SCALE * jnp.where(x > 0, x, SELU_ALPHA * (jnp.exp(x) - 1.0))


def deepsurv_kernel(x_ref,
                    w1_ref, b1_ref,
                    w2_ref, b2_ref,
                    w3_ref, b3_ref,
                    w4_ref, b4_ref,
                    o_ref):
    # Layer 1: bf16 x tile (already bf16 in HBM) x bf16 weights, f32 accumulate.
    h = jnp.dot(x_ref[...], w1_ref[...],
                preferred_element_type=jnp.float32) + b1_ref[...]
    h = _selu(h)                                                   # (TB, 512) f32

    # Layer 2
    h = jnp.dot(h.astype(jnp.bfloat16), w2_ref[...],
                preferred_element_type=jnp.float32) + b2_ref[...]
    h = _selu(h)                                                   # (TB, 256) f32

    # Layer 3
    h = jnp.dot(h.astype(jnp.bfloat16), w3_ref[...],
                preferred_element_type=jnp.float32) + b3_ref[...]
    h = _selu(h)                                                   # (TB, 128) f32

    # Layer 4 (25 -> 1), kept in f32: elementwise multiply against the single
    # real weight column + lane reduction (XLU); avoids a 128x-padded output.
    risk = jnp.sum(h * w4_ref[...], axis=-1, keepdims=True) + b4_ref[...]
    o_ref[...] = risk.astype(o_ref.dtype)                          # (TB, 1)


def _pad_linear(w, b, pad_in, pad_out, w_dtype):
    """Zero-pad (in,out) weight to (pad_in,pad_out) in w_dtype; bias to (1,pad_out) f32."""
    wp = jnp.zeros((pad_in, pad_out), w_dtype)
    wp = wp.at[: w.shape[0], : w.shape[1]].set(w.astype(w_dtype))
    bp = jnp.zeros((1, pad_out), jnp.float32).at[0, : b.shape[0]].set(b)
    return wp, bp


def _choose_batch_tile(B, batch_tile):
    b_ceil = _round_up(B, _SUBLANE)
    tb = min(batch_tile, b_ceil)
    # v7x megacore: keep >= 2 grid steps whenever the batch allows, so the
    # "parallel" batch axis shards across both TensorCores (no-op on v5e/v6e).
    if b_ceil >= 2 * _SUBLANE:
        half = _round_up((b_ceil + 1) // 2, _SUBLANE)
        tb = min(tb, half)
    # v6e/v7x MXU is 256x256: snap large tiles to a 256 multiple.
    if tb >= 256:
        tb = (tb // 256) * 256
    return max(tb, _SUBLANE)


def deepsurv_forward(x, params, *, batch_tile=512):
    """x: (B, D_in) float32; params: list of (W, b) with W shaped (in, out)."""
    B, d_in = x.shape
    (w1, b1), (w2, b2), (w3, b3), (w4, b4) = params

    # Lane-aligned padded layer widths: D_in -> mult of 128, 500->512, 200->256, 25->128.
    d0 = _round_up(d_in, _LANE)
    d1, d2, d3 = 512, 256, 128

    # Layers 1-3: bf16 weights (MXU operands), f32 biases.
    w1p, b1p = _pad_linear(w1, b1, d0, d1, jnp.bfloat16)
    w2p, b2p = _pad_linear(w2, b2, d1, d2, jnp.bfloat16)
    w3p, b3p = _pad_linear(w3, b3, d2, d3, jnp.bfloat16)
    # Layer 4 stays f32: single real column stored as a (1, d3) row + (1,1) bias.
    w4p = jnp.zeros((1, d3), jnp.float32).at[0, : w4.shape[0]].set(w4[:, 0])
    b4p = b4.reshape(1, 1).astype(jnp.float32)

    tb = _choose_batch_tile(B, batch_tile)
    b_pad = _round_up(B, tb)

    # x stored as bf16 in HBM (halves the per-step x DMA); padded rows are zero
    # and sliced off at the end.
    x_p = jnp.zeros((b_pad, d0), jnp.bfloat16).at[:B, :d_in].set(x.astype(jnp.bfloat16))

    grid = (b_pad // tb,)

    weight_args = (w1p, b1p, w2p, b2p, w3p, b3p, w4p, b4p)
    in_specs = [pl.BlockSpec((tb, d0), lambda i: (i, 0))]
    for a in weight_args:
        in_specs.append(pl.BlockSpec(a.shape, lambda i: (0, 0)))   # resident in VMEM

    out = pl.pallas_call(
        deepsurv_kernel,
        out_shape=jax.ShapeDtypeStruct((b_pad, 1), jnp.float32),
        grid=grid,
        in_specs=in_specs,
        out_specs=pl.BlockSpec((tb, 1), lambda i: (i, 0)),
        compiler_params=pltpu.CompilerParams(
            dimension_semantics=("parallel",)),
    )(x_p, *weight_args)

    return out[:B]                                                 # (B, 1) risk


def init_params(key, dims):
    """Deterministic PyTorch-Linear-style init: U(-1/sqrt(fan_in), 1/sqrt(fan_in)).
    Weights returned as (in_features, out_features)."""
    params = []
    for i in range(len(dims) - 1):
        fan_in, fan_out = dims[i], dims[i + 1]
        key, kw, kb = jax.random.split(key, 3)
        bound = 1.0 / jnp.sqrt(jnp.float32(fan_in))
        w = jax.random.uniform(kw, (fan_in, fan_out), jnp.float32, -bound, bound)
        b = jax.random.uniform(kb, (fan_out,), jnp.float32, -bound, bound)
        params.append((w, b))
    return params


def _reference_forward(x, params):
    """Plain-JAX reference matching the kernel's precision recipe:
    bf16 matmul operands / f32 accumulate for layers 1-3, f32 elementwise
    multiply + reduce for the final layer, f32 bias/SELU everywhere."""
    h = x
    n = len(params)
    for i, (w, b) in enumerate(params):
        if i < n - 1:
            h = jnp.dot(h.astype(jnp.bfloat16), w.astype(jnp.bfloat16),
                        preferred_element_type=jnp.float32) + b
            h = _selu(h)
        else:
            h = jnp.sum(h * w[:, 0][None, :], axis=-1, keepdims=True) + b
    return h


if __name__ == "__main__":
    key = jax.random.PRNGKey(0)
    batch = 8
    input_nodes = 32
    dims = [input_nodes, 500, 200, 25, 1]

    key, kx = jax.random.split(key)
    x = jax.random.normal(kx, (batch, input_nodes), jnp.float32)

    params = init_params(key, dims)

    risk = deepsurv_forward(x, params)
    jax.block_until_ready(risk)

    ref = _reference_forward(x, params)

    assert risk.shape == (batch, 1)
    max_err = jnp.max(jnp.abs(risk - ref))
    assert jnp.allclose(risk, ref, atol=5e-3, rtol=5e-3), f"max abs err = {max_err}"

    print("KERNEL_OK")
</pallas_src>

<mosaic_0001>
module attributes {stable_mosaic.version = 11 : i64} {
  func.func @deepsurv_kernel(%arg0: i32, %arg1: memref<8x128xbf16, #tpu.memory_space<vmem>>, %arg2: memref<128x512xbf16, #tpu.memory_space<vmem>>, %arg3: memref<1x512xf32, #tpu.memory_space<vmem>>, %arg4: memref<512x256xbf16, #tpu.memory_space<vmem>>, %arg5: memref<1x256xf32, #tpu.memory_space<vmem>>, %arg6: memref<256x128xbf16, #tpu.memory_space<vmem>>, %arg7: memref<1x128xf32, #tpu.memory_space<vmem>>, %arg8: memref<1x128xf32, #tpu.memory_space<vmem>>, %arg9: memref<1x1xf32, #tpu.memory_space<vmem>>, %arg10: memref<8x1xf32, #tpu.memory_space<vmem>>) attributes {dimension_semantics = [#tpu.dimension_semantics<parallel>], iteration_bounds = array<i64: 1>, scalar_prefetch = 0 : i64, scratch_operands = 0 : i64, tpu.core_type = #tpu.core_type<tc>, window_params = [{transform_indices = @transform_0, window_bounds = array<i64: 8, 128>}, {pipeline_mode = #tpu.pipeline_mode<synchronous>, transform_indices = @transform_1, window_bounds = array<i64: 128, 512>}, {pipeline_mode = #tpu.pipeline_mode<synchronous>, transform_indices = @transform_2, window_bounds = array<i64: 1, 512>}, {pipeline_mode = #tpu.pipeline_mode<synchronous>, transform_indices = @transform_3, window_bounds = array<i64: 512, 256>}, {pipeline_mode = #tpu.pipeline_mode<synchronous>, transform_indices = @transform_4, window_bounds = array<i64: 1, 256>}, {pipeline_mode = #tpu.pipeline_mode<synchronous>, transform_indices = @transform_5, window_bounds = array<i64: 256, 128>}, {pipeline_mode = #tpu.pipeline_mode<synchronous>, transform_indices = @transform_6, window_bounds = array<i64: 1, 128>}, {pipeline_mode = #tpu.pipeline_mode<synchronous>, transform_indices = @transform_7, window_bounds = array<i64: 1, 128>}, {pipeline_mode = #tpu.pipeline_mode<synchronous>, transform_indices = @transform_8, window_bounds = array<i64: 1, 1>}, {transform_indices = @transform_9, window_bounds = array<i64: 8, 1>}]} {
    %c0 = arith.constant 0 : index
    %c0_0 = arith.constant 0 : index
    %0 = vector.load %arg1[%c0, %c0_0] : memref<8x128xbf16, #tpu.memory_space<vmem>>, vector<8x128xbf16>
    %c0_1 = arith.constant 0 : index
    %c0_2 = arith.constant 0 : index
    %1 = vector.load %arg2[%c0_1, %c0_2] : memref<128x512xbf16, #tpu.memory_space<vmem>>, vector<128x512xbf16>
    %cst = arith.constant dense<0.000000e+00> : vector<8x512xf32>
    %2 = tpu.matmul %0, %1, %cst {dimension_numbers = #tpu.dot_dimension_numbers<[1], [0], [0], [1], [0, 0, 1, 1], [], []>} : vector<8x128xbf16>, vector<128x512xbf16>, vector<8x512xf32> -> vector<8x512xf32>
    %c0_3 = arith.constant 0 : index
    %c0_4 = arith.constant 0 : index
    %3 = vector.load %arg3[%c0_3, %c0_4] : memref<1x512xf32, #tpu.memory_space<vmem>>, vector<1x512xf32>
    %4 = vector.broadcast %3 : vector<1x512xf32> to vector<8x512xf32>
    %5 = arith.addf %2, %4 : vector<8x512xf32>
    %cst_5 = arith.constant 0.000000e+00 : f32
    %6 = vector.broadcast %cst_5 : f32 to vector<8x512xf32>
    %7 = arith.cmpf ogt, %5, %6 : vector<8x512xf32>
    %8 = math.exp %5 : vector<8x512xf32>
    %cst_6 = arith.constant 1.000000e+00 : f32
    %9 = vector.broadcast %cst_6 : f32 to vector<8x512xf32>
    %10 = arith.subf %8, %9 : vector<8x512xf32>
    %cst_7 = arith.constant 1.67326319 : f32
    %11 = vector.broadcast %cst_7 : f32 to vector<8x512xf32>
    %12 = arith.mulf %11, %10 : vector<8x512xf32>
    %13 = arith.select %7, %5, %12 : vector<8x512xi1>, vector<8x512xf32>
    %cst_8 = arith.constant 1.05070102 : f32
    %14 = vector.broadcast %cst_8 : f32 to vector<8x512xf32>
    %15 = arith.mulf %14, %13 : vector<8x512xf32>
    %16 = arith.truncf %15 : vector<8x512xf32> to vector<8x512xbf16>
    %c0_9 = arith.constant 0 : index
    %c0_10 = arith.constant 0 : index
    %17 = vector.load %arg4[%c0_9, %c0_10] : memref<512x256xbf16, #tpu.memory_space<vmem>>, vector<512x256xbf16>
    %cst_11 = arith.constant dense<0.000000e+00> : vector<8x256xf32>
    %18 = tpu.matmul %16, %17, %cst_11 {dimension_numbers = #tpu.dot_dimension_numbers<[1], [0], [0], [1], [0, 0, 1, 1], [], []>} : vector<8x512xbf16>, vector<512x256xbf16>, vector<8x256xf32> -> vector<8x256xf32>
    %c0_12 = arith.constant 0 : index
    %c0_13 = arith.constant 0 : index
    %19 = vector.load %arg5[%c0_12, %c0_13] : memref<1x256xf32, #tpu.memory_space<vmem>>, vector<1x256xf32>
    %20 = vector.broadcast %19 : vector<1x256xf32> to vector<8x256xf32>
    %21 = arith.addf %18, %20 : vector<8x256xf32>
    %cst_14 = arith.constant 0.000000e+00 : f32
    %22 = vector.broadcast %cst_14 : f32 to vector<8x256xf32>
    %23 = arith.cmpf ogt, %21, %22 : vector<8x256xf32>
    %24 = math.exp %21 : vector<8x256xf32>
    %cst_15 = arith.constant 1.000000e+00 : f32
    %25 = vector.broadcast %cst_15 : f32 to vector<8x256xf32>
    %26 = arith.subf %24, %25 : vector<8x256xf32>
    %cst_16 = arith.constant 1.67326319 : f32
    %27 = vector.broadcast %cst_16 : f32 to vector<8x256xf32>
    %28 = arith.mulf %27, %26 : vector<8x256xf32>
    %29 = arith.select %23, %21, %28 : vector<8x256xi1>, vector<8x256xf32>
    %cst_17 = arith.constant 1.05070102 : f32
    %30 = vector.broadcast %cst_17 : f32 to vector<8x256xf32>
    %31 = arith.mulf %30, %29 : vector<8x256xf32>
    %32 = arith.truncf %31 : vector<8x256xf32> to vector<8x256xbf16>
    %c0_18 = arith.constant 0 : index
    %c0_19 = arith.constant 0 : index
    %33 = vector.load %arg6[%c0_18, %c0_19] : memref<256x128xbf16, #tpu.memory_space<vmem>>, vector<256x128xbf16>
    %cst_20 = arith.constant dense<0.000000e+00> : vector<8x128xf32>
    %34 = tpu.matmul %32, %33, %cst_20 {dimension_numbers = #tpu.dot_dimension_numbers<[1], [0], [0], [1], [0, 0, 1, 1], [], []>} : vector<8x256xbf16>, vector<256x128xbf16>, vector<8x128xf32> -> vector<8x128xf32>
    %c0_21 = arith.constant 0 : index
    %c0_22 = arith.constant 0 : index
    %35 = vector.load %arg7[%c0_21, %c0_22] : memref<1x128xf32, #tpu.memory_space<vmem>>, vector<1x128xf32>
    %36 = vector.broadcast %35 : vector<1x128xf32> to vector<8x128xf32>
    %37 = arith.addf %34, %36 : vector<8x128xf32>
    %cst_23 = arith.constant 0.000000e+00 : f32
    %38 = vector.broadcast %cst_23 : f32 to vector<8x128xf32>
    %39 = arith.cmpf ogt, %37, %38 : vector<8x128xf32>
    %40 = math.exp %37 : vector<8x128xf32>
    %cst_24 = arith.constant 1.000000e+00 : f32
    %41 = vector.broadcast %cst_24 : f32 to vector<8x128xf32>
    %42 = arith.subf %40, %41 : vector<8x128xf32>
    %cst_25 = arith.constant 1.67326319 : f32
    %43 = vector.broadcast %cst_25 : f32 to vector<8x128xf32>
    %44 = arith.mulf %43, %42 : vector<8x128xf32>
    %45 = arith.select %39, %37, %44 : vector<8x128xi1>, vector<8x128xf32>
    %cst_26 = arith.constant 1.05070102 : f32
    %46 = vector.broadcast %cst_26 : f32 to vector<8x128xf32>
    %47 = arith.mulf %46, %45 : vector<8x128xf32>
    %c0_27 = arith.constant 0 : index
    %c0_28 = arith.constant 0 : index
    %48 = vector.load %arg8[%c0_27, %c0_28] : memref<1x128xf32, #tpu.memory_space<vmem>>, vector<1x128xf32>
    %49 = vector.broadcast %48 : vector<1x128xf32> to vector<8x128xf32>
    %50 = arith.mulf %47, %49 : vector<8x128xf32>
    %cst_29 = arith.constant dense<0.000000e+00> : vector<8xf32>
    %51 = vector.multi_reduction <add>, %50, %cst_29 [1] : vector<8x128xf32> to vector<8xf32>
    %52 = vector.shape_cast %51 : vector<8xf32> to vector<8x1xf32>
    %c0_30 = arith.constant 0 : index
    %c0_31 = arith.constant 0 : index
    %53 = vector.load %arg9[%c0_30, %c0_31] : memref<1x1xf32, #tpu.memory_space<vmem>>, vector<1x1xf32>
    %54 = vector.broadcast %53 : vector<1x1xf32> to vector<8x1xf32>
    %55 = arith.addf %52, %54 : vector<8x1xf32>
    %c0_32 = arith.constant 0 : index
    %c0_33 = arith.constant 0 : index
    %56 = vector.load %arg10[%c0_32, %c0_33] : memref<8x1xf32, #tpu.memory_space<vmem>>, vector<8x1xf32>
    tpu.vector_store %arg10[%c0_32, %c0_33], %55 {strides = array<i32>} : memref<8x1xf32, #tpu.memory_space<vmem>>, vector<8x1xf32>,
    return
  }
  func.func @transform_0(%arg0: i32) -> (i32, i32) {
    %c0_i32 = arith.constant 0 : i32
    %c0_i32_0 = arith.constant 0 : i32
    return %arg0, %c0_i32 : i32, i32
  }
  func.func @transform_1(%arg0: i32) -> (i32, i32) {
    %c0_i32 = arith.constant 0 : i32
    %c0_i32_0 = arith.constant 0 : i32
    %c0_i32_1 = arith.constant 0 : i32
    return %c0_i32, %c0_i32_0 : i32, i32
  }
  func.func @transform_2(%arg0: i32) -> (i32, i32) {
    %c0_i32 = arith.constant 0 : i32
    %c0_i32_0 = arith.constant 0 : i32
    %c0_i32_1 = arith.constant 0 : i32
    return %c0_i32, %c0_i32_0 : i32, i32
  }
  func.func @transform_3(%arg0: i32) -> (i32, i32) {
    %c0_i32 = arith.constant 0 : i32
    %c0_i32_0 = arith.constant 0 : i32
    %c0_i32_1 = arith.constant 0 : i32
    return %c0_i32, %c0_i32_0 : i32, i32
  }
  func.func @transform_4(%arg0: i32) -> (i32, i32) {
    %c0_i32 = arith.constant 0 : i32
    %c0_i32_0 = arith.constant 0 : i32
    %c0_i32_1 = arith.constant 0 : i32
    return %c0_i32, %c0_i32_0 : i32, i32
  }
  func.func @transform_5(%arg0: i32) -> (i32, i32) {
    %c0_i32 = arith.constant 0 : i32
    %c0_i32_0 = arith.constant 0 : i32
    %c0_i32_1 = arith.constant 0 : i32
    return %c0_i32, %c0_i32_0 : i32, i32
  }
  func.func @transform_6(%arg0: i32) -> (i32, i32) {
    %c0_i32 = arith.constant 0 : i32
    %c0_i32_0 = arith.constant 0 : i32
    %c0_i32_1 = arith.constant 0 : i32
    return %c0_i32, %c0_i32_0 : i32, i32
  }
  func.func @transform_7(%arg0: i32) -> (i32, i32) {
    %c0_i32 = arith.constant 0 : i32
    %c0_i32_0 = arith.constant 0 : i32
    %c0_i32_1 = arith.constant 0 : i32
    return %c0_i32, %c0_i32_0 : i32, i32
  }
  func.func @transform_8(%arg0: i32) -> (i32, i32) {
    %c0_i32 = arith.constant 0 : i32
    %c0_i32_0 = arith.constant 0 : i32
    %c0_i32_1 = arith.constant 0 : i32
    return %c0_i32, %c0_i32_0 : i32, i32
  }
  func.func @transform_9(%arg0: i32) -> (i32, i32) {
    %c0_i32 = arith.constant 0 : i32
    %c0_i32_0 = arith.constant 0 : i32
    return %arg0, %c0_i32 : i32, i32
  }
}

</mosaic_0001>

<llo_original>
// kernel: tpu_custom_call.1
$region0: #{tpu_custom_call.1}
  #allocation0 [shape = 'u32[]', space=smem, size = 0x4, offset = 0x4, fixed_abs, tag = 'smem constant byte address 0x4 - core index']
  #allocation1 [shape = 'u32[144,128]{1,0:T(1,128)}', space=vmem, size = 0x12000, scoped, tag = 'internal scratch']
  #allocation2 [shape = 'f32[1,1]{1,0:T(1,128)S(1)}', space=vmem, size = 0x200, scoped, tag = 'scoped memory for tpu_custom_call.1']
  %s0 = inlined_call_operand.hbm [shape: bf16[8,128], index: 0, kind: input, shape index: {}]
  %s1 = inlined_call_operand.hbm [shape: bf16[128,512], index: 1, kind: input, shape index: {}]
  %s2 = inlined_call_operand.vmem [shape: f32[1,512], index: 2, kind: input, shape index: {}]
  %s3 = inlined_call_operand.hbm [shape: bf16[512,256], index: 3, kind: input, shape index: {}]
  %s4 = inlined_call_operand.vmem [shape: f32[1,256], index: 4, kind: input, shape index: {}]
  %s5 = inlined_call_operand.hbm [shape: bf16[256,128], index: 5, kind: input, shape index: {}]
  %s6 = inlined_call_operand.vmem [shape: f32[1,128], index: 6, kind: input, shape index: {}]
  %s7 = inlined_call_operand.vmem [shape: f32[1,128], index: 7, kind: input, shape index: {}]
  %s8 = inlined_call_operand.<no memory space> [shape: f32[1,1], index: 8, kind: input, shape index: {}]
  %s9 = inlined_call_operand.vmem [shape: f32[8,1], index: 9, kind: output, shape index: {}]
  %s10 = sld [smem:[#allocation0]]
  $region62: #{tpu_custom_call.1} parent=0
    _
  %s12 = ssub.s32 1, %s10
  %s13 = scalar_select 0, %s12, %s10
  %v14 = vstv %s8
  %15 = vst [vmem:[#allocation2] sm:$0x1] %v14
  $region1: #{tpu_custom_call.1} parent=0
    #allocation3 [shape = 'u8[2048]{0}', space=vmem, size = 0x800, scoped, tag = 'input window, operand 0, single buffered']
    #allocation4 [shape = 's32[1]{0}', space=sflag, size = 0x4, scoped, tag = 'scoped memory for tpu_custom_call.1']
    #allocation5 [shape = 'u8[131072]{0}', space=vmem, size = 0x20000, scoped, tag = 'input window, operand 1, single buffered']
    #allocation6 [shape = 's32[1]{0}', space=sflag, size = 0x4, scoped, tag = 'scoped memory for tpu_custom_call.1']
    #allocation7 [shape = 'u8[262144]{0}', space=vmem, size = 0x40000, scoped, tag = 'input window, operand 3, single buffered']
    #allocation8 [shape = 'u8[65536]{0}', space=vmem, size = 0x10000, scoped, tag = 'input window, operand 5, single buffered']
    #allocation9 [shape = 's32[1]{0}', space=sflag, size = 0x4, scoped, tag = 'scoped memory for tpu_custom_call.1']
    %16 = vsyncpa [#allocation4], 0
    %17 = vsyncpa [#allocation6], 0
    %18 = vsyncpa [#allocation9], 0
    // Predicated region
    $region2: #{tpu_custom_call.1} parent=1 // pred_check
      _
    $region3: #{tpu_custom_call.1} parent=1 // pred_check_branch
      %20 = sbr.rel (0) target = $region5
    $region4: #{tpu_custom_call.1} parent=1 // pred_region
      %s22 = ssub.s32 64, 64
      %23 = vsyncadd [#allocation4], %s22
      %s25 = sshll.u32 [#allocation3], 4
      %s26 = int_to_ptr.vmem [resolvable:$true] %s25
      %28 = dma.hbm_to_vmem [thread:$0]  %s0, 64, %s26, [#allocation4]
    $region5: #{tpu_custom_call.1} parent=1 // pred_fallthru
      _
    // Predicated region
    $region6: #{tpu_custom_call.1} parent=1 // pred_check
      _
    $region7: #{tpu_custom_call.1} parent=1 // pred_check_branch
      %30 = sbr.rel (0) target = $region9
    $region8: #{tpu_custom_call.1} parent=1 // pred_region
      %s32 = ssub.s32 4096, 4096
      %33 = vsyncadd [#allocation6], %s32
      %s34 = sshll.u32 [#allocation5], 4
      %s35 = int_to_ptr.vmem [resolvable:$true] %s34
      %40 = dma.hbm_to_vmem [thread:$0]  %s1, 4096, %s35, [#allocation6], 256, 256, 16
    $region9: #{tpu_custom_call.1} parent=1 // pred_fallthru
      _
    // Predicated region
    $region10: #{tpu_custom_call.1} parent=1 // pred_check
      _
    $region11: #{tpu_custom_call.1} parent=1 // pred_check_branch
      %42 = sbr.rel (0) target = $region13
    $region12: #{tpu_custom_call.1} parent=1 // pred_region
      _
    $region13: #{tpu_custom_call.1} parent=1 // pred_fallthru
      _
    // Predicated region
    $region14: #{tpu_custom_call.1} parent=1 // pred_check
      _
    $region15: #{tpu_custom_call.1} parent=1 // pred_check_branch
      %44 = sbr.rel (0) target = $region17
    $region16: #{tpu_custom_call.1} parent=1 // pred_region
      %s46 = ssub.s32 8192, 8192
      %47 = vsyncadd [#allocation6], %s46
      %s48 = sshll.u32 [#allocation7], 4
      %s49 = int_to_ptr.vmem [resolvable:$true] %s48
      %54 = dma.hbm_to_vmem [thread:$0]  %s3, 8192, %s49, [#allocation6], 128, 128, 8
    $region17: #{tpu_custom_call.1} parent=1 // pred_fallthru
      _
    // Predicated region
    $region18: #{tpu_custom_call.1} parent=1 // pred_check
      _
    $region19: #{tpu_custom_call.1} parent=1 // pred_check_branch
      %56 = sbr.rel (0) target = $region21
    $region20: #{tpu_custom_call.1} parent=1 // pred_region
      _
    $region21: #{tpu_custom_call.1} parent=1 // pred_fallthru
      _
    // Predicated region
    $region22: #{tpu_custom_call.1} parent=1 // pred_check
      _
    $region23: #{tpu_custom_call.1} parent=1 // pred_check_branch
      %58 = sbr.rel (0) target = $region25
    $region24: #{tpu_custom_call.1} parent=1 // pred_region
      %s60 = ssub.s32 2048, 2048
      %61 = vsyncadd [#allocation9], %s60
      %s62 = sshll.u32 [#allocation8], 4
      %s63 = int_to_ptr.vmem [resolvable:$true] %s62
      %68 = dma.hbm_to_vmem [thread:$0]  %s5, 2048, %s63, [#allocation9], 64, 64, 4
    $region25: #{tpu_custom_call.1} parent=1 // pred_fallthru
      _
    // Predicated region
    $region26: #{tpu_custom_call.1} parent=1 // pred_check
      _
    $region27: #{tpu_custom_call.1} parent=1 // pred_check_branch
      %70 = sbr.rel (0) target = $region29
    $region28: #{tpu_custom_call.1} parent=1 // pred_region
      _
    $region29: #{tpu_custom_call.1} parent=1 // pred_fallthru
      _
    // Predicated region
    $region30: #{tpu_custom_call.1} parent=1 // pred_check
      _
    $region31: #{tpu_custom_call.1} parent=1 // pred_check_branch
      %72 = sbr.rel (0) target = $region33
    $region32: #{tpu_custom_call.1} parent=1 // pred_region
      _
    $region33: #{tpu_custom_call.1} parent=1 // pred_fallthru
      _
    // Predicated region
    $region34: #{tpu_custom_call.1} parent=1 // pred_check
      _
    $region35: #{tpu_custom_call.1} parent=1 // pred_check_branch
      %74 = sbr.rel (0) target = $region37
    $region36: #{tpu_custom_call.1} parent=1 // pred_region
      _
    $region37: #{tpu_custom_call.1} parent=1 // pred_fallthru
      _
    // Predicated region
    $region38: #{tpu_custom_call.1} parent=1 // pred_check
      _
    $region39: #{tpu_custom_call.1} parent=1 // pred_check_branch
      %76 = sbr.rel (0) target = $region41
    $region40: #{tpu_custom_call.1} parent=1 // pred_region
      %77 = dma.done [#allocation4], 64
    $region41: #{tpu_custom_call.1} parent=1 // pred_fallthru
      _
    // Predicated region
    $region42: #{tpu_custom_call.1} parent=1 // pred_check
      _
    $region43: #{tpu_custom_call.1} parent=1 // pred_check_branch
      %79 = sbr.rel (0) target = $region45
    $region44: #{tpu_custom_call.1} parent=1 // pred_region
      %80 = dma.done [#allocation6], 4096
    $region45: #{tpu_custom_call.1} parent=1 // pred_fallthru
      _
    // Predicated region
    $region46: #{tpu_custom_call.1} parent=1 // pred_check
      _
    $region47: #{tpu_custom_call.1} parent=1 // pred_check_branch
      %82 = sbr.rel (0) target = $region49
    $region48: #{tpu_custom_call.1} parent=1 // pred_region
      %83 = dma.done [#allocation6], 8192
    $region49: #{tpu_custom_call.1} parent=1 // pred_fallthru
      _
    // Predicated region
    $region50: #{tpu_custom_call.1} parent=1 // pred_check
      _
    $region51: #{tpu_custom_call.1} parent=1 // pred_check_branch
      %85 = sbr.rel (0) target = $region53
    $region52: #{tpu_custom_call.1} parent=1 // pred_region
      %86 = dma.done [#allocation9], 2048
    $region53: #{tpu_custom_call.1} parent=1 // pred_fallthru
      _
    %v88 = vld [vmem:[#allocation3] sm:$0xf]
    %v89 = vld [vmem:[#allocation5] sm:$0xff]
    %v90 = vld [vmem:[#allocation5 + $0x8] sm:$0xff]
    %v91 = vld [vmem:[#allocation5 + $0x10] sm:$0xff]
    %v92 = vld [vmem:[#allocation5 + $0x18] sm:$0xff]
    %v93 = vld [vmem:[#allocation5 + $0x20] sm:$0xff]
    %v94 = vld [vmem:[#allocation5 + $0x28] sm:$0xff]
    %v95 = vld [vmem:[#allocation5 + $0x30] sm:$0xff]
    %v96 = vld [vmem:[#allocation5 + $0x38] sm:$0xff]
    %v97 = vld [vmem:[#allocation5 + $0x40] sm:$0xff]
    %v98 = vld [vmem:[#allocation5 + $0x48] sm:$0xff]
    %v99 = vld [vmem:[#allocation5 + $0x50] sm:$0xff]
    %v100 = vld [vmem:[#allocation5 + $0x58] sm:$0xff]
    %v101 = vld [vmem:[#allocation5 + $0x60] sm:$0xff]
    %v102 = vld [vmem:[#allocation5 + $0x68] sm:$0xff]
    %v103 = vld [vmem:[#allocation5 + $0x70] sm:$0xff]
    %v104 = vld [vmem:[#allocation5 + $0x78] sm:$0xff]
    %v105 = vld [vmem:[#allocation5 + $0x80] sm:$0xff]
    %v106 = vld [vmem:[#allocation5 + $0x88] sm:$0xff]
    %v107 = vld [vmem:[#allocation5 + $0x90] sm:$0xff]
    %v108 = vld [vmem:[#allocation5 + $0x98] sm:$0xff]
    %v109 = vld [vmem:[#allocation5 + $0xa0] sm:$0xff]
    %v110 = vld [vmem:[#allocation5 + $0xa8] sm:$0xff]
    %v111 = vld [vmem:[#allocation5 + $0xb0] sm:$0xff]
    %v112 = vld [vmem:[#allocation5 + $0xb8] sm:$0xff]
    %v113 = vld [vmem:[#allocation5 + $0xc0] sm:$0xff]
    %v114 = vld [vmem:[#allocation5 + $0xc8] sm:$0xff]
    %v115 = vld [vmem:[#allocation5 + $0xd0] sm:$0xff]
    %v116 = vld [vmem:[#allocation5 + $0xd8] sm:$0xff]
    %v117 = vld [vmem:[#allocation5 + $0xe0] sm:$0xff]
    %v118 = vld [vmem:[#allocation5 + $0xe8] sm:$0xff]
    %v119 = vld [vmem:[#allocation5 + $0xf0] sm:$0xff]
    %v120 = vld [vmem:[#allocation5 + $0xf8] sm:$0xff]
    %v121 = vld [vmem:[%s2] sm:$0xf]
    %v123 = vlaneseq
    %v124 = vshrl.u32 %v123, 7
    %v125 = vsub.s32 0, %v124
    %v126 = vrot.slane %v121, %v125
    %v127 = vlaneseq
    %v128 = vshrl.u32 %v127, 7
    %v129 = vsub.s32 1, %v128
    %v130 = vrot.slane %v121, %v129
    %v131 = vlaneseq
    %v132 = vshrl.u32 %v131, 7
    %v133 = vsub.s32 2, %v132
    %v134 = vrot.slane %v121, %v133
    %v135 = vlaneseq
    %v136 = vshrl.u32 %v135, 7
    %v137 = vsub.s32 3, %v136
    %v138 = vrot.slane %v121, %v137
    %v175 = vunpack.c.l.b16 %v89
    %v176 = vunpack.c.h.b16 %v89
    %v177 = vunpack.c.l.b16 %v90
    %v178 = vunpack.c.h.b16 %v90
    %v179 = vunpack.c.l.b16 %v91
    %v180 = vunpack.c.h.b16 %v91
    %v181 = vunpack.c.l.b16 %v92
    %v182 = vunpack.c.h.b16 %v92
    %v183 = vunpack.c.l.b16 %v93
    %v184 = vunpack.c.h.b16 %v93
    %v185 = vunpack.c.l.b16 %v94
    %v186 = vunpack.c.h.b16 %v94
    %v187 = vunpack.c.l.b16 %v95
    %v188 = vunpack.c.h.b16 %v95
    %v189 = vunpack.c.l.b16 %v96
    %v190 = vunpack.c.h.b16 %v96
    %v191 = vunpack.c.l.b16 %v97
    %v192 = vunpack.c.h.b16 %v97
    %v193 = vunpack.c.l.b16 %v98
    %v194 = vunpack.c.h.b16 %v98
    %v195 = vunpack.c.l.b16 %v99
    %v196 = vunpack.c.h.b16 %v99
    %v197 = vunpack.c.l.b16 %v100
    %v198 = vunpack.c.h.b16 %v100
    %v199 = vunpack.c.l.b16 %v101
    %v200 = vunpack.c.h.b16 %v101
    %v201 = vunpack.c.l.b16 %v102
    %v202 = vunpack.c.h.b16 %v102
    %v203 = vunpack.c.l.b16 %v103
    %v204 = vunpack.c.h.b16 %v103
    %v205 = vunpack.c.l.b16 %v104
    %v206 = vunpack.c.h.b16 %v104
    %v207 = vunpack.c.l.b16 %v105
    %v208 = vunpack.c.h.b16 %v105
    %v209 = vunpack.c.l.b16 %v106
    %v210 = vunpack.c.h.b16 %v106
    %v211 = vunpack.c.l.b16 %v107
    %v212 = vunpack.c.h.b16 %v107
    %v213 = vunpack.c.l.b16 %v108
    %v214 = vunpack.c.h.b16 %v108
    %v215 = vunpack.c.l.b16 %v109
    %v216 = vunpack.c.h.b16 %v109
    %v217 = vunpack.c.l.b16 %v110
    %v218 = vunpack.c.h.b16 %v110
    %v219 = vunpack.c.l.b16 %v111
    %v220 = vunpack.c.h.b16 %v111
    %v221 = vunpack.c.l.b16 %v112
    %v222 = vunpack.c.h.b16 %v112
    %v223 = vunpack.c.l.b16 %v113
    %v224 = vunpack.c.h.b16 %v113
    %v225 = vunpack.c.l.b16 %v114
    %v226 = vunpack.c.h.b16 %v114
    %v227 = vunpack.c.l.b16 %v115
    %v228 = vunpack.c.h.b16 %v115
    %v229 = vunpack.c.l.b16 %v116
    %v230 = vunpack.c.h.b16 %v116
    %v231 = vunpack.c.l.b16 %v117
    %v232 = vunpack.c.h.b16 %v117
    %v233 = vunpack.c.l.b16 %v118
    %v234 = vunpack.c.h.b16 %v118
    %v235 = vunpack.c.l.b16 %v119
    %v236 = vunpack.c.h.b16 %v119
    %v237 = vunpack.c.l.b16 %v120
    %v238 = vunpack.c.h.b16 %v120
    %v239 = vpack.c.b16 %v179, %v175
    %v240 = vpack.c.b16 %v180, %v176
    %v241 = vpack.c.b16 %v181, %v177
    %v242 = vpack.c.b16 %v182, %v178
    %v243 = vpack.c.b16 %v187, %v183
    %v244 = vpack.c.b16 %v188, %v184
    %v245 = vpack.c.b16 %v189, %v185
    %v246 = vpack.c.b16 %v190, %v186
    %v247 = vpack.c.b16 %v195, %v191
    %v248 = vpack.c.b16 %v196, %v192
    %v249 = vpack.c.b16 %v197, %v193
    %v250 = vpack.c.b16 %v198, %v194
    %v251 = vpack.c.b16 %v203, %v199
    %v252 = vpack.c.b16 %v204, %v200
    %v253 = vpack.c.b16 %v205, %v201
    %v254 = vpack.c.b16 %v206, %v202
    %v255 = vpack.c.b16 %v211, %v207
    %v256 = vpack.c.b16 %v212, %v208
    %v257 = vpack.c.b16 %v213, %v209
    %v258 = vpack.c.b16 %v214, %v210
    %v259 = vpack.c.b16 %v219, %v215
    %v260 = vpack.c.b16 %v220, %v216
    %v261 = vpack.c.b16 %v221, %v217
    %v262 = vpack.c.b16 %v222, %v218
    %v263 = vpack.c.b16 %v227, %v223
    %v264 = vpack.c.b16 %v228, %v224
    %v265 = vpack.c.b16 %v229, %v225
    %v266 = vpack.c.b16 %v230, %v226
    %v267 = vpack.c.b16 %v235, %v231
    %v268 = vpack.c.b16 %v236, %v232
    %v269 = vpack.c.b16 %v237, %v233
    %v270 = vpack.c.b16 %v238, %v234
    %303 = vmatprep.subr.bf16.mxu0 %v240
    %304 = vmatpush1.bf16.msra.mxu0 %v239
    %305 = vmatprep.subr.bf16.mxu0 %v244
    %306 = vmatpush1.bf16.msra.mxu0 %v243
    %307 = vmatprep.subr.bf16.mxu0 %v248
    %308 = vmatpush1.bf16.msra.mxu0 %v247
    %309 = vmatprep.subr.bf16.mxu0 %v252
    %310 = vmatpush1.bf16.msra.mxu0 %v251
    %311 = vmatprep.subr.bf16.mxu0 %v256
    %312 = vmatpush1.bf16.msra.mxu0 %v255
    %313 = vmatprep.subr.bf16.mxu0 %v260
    %314 = vmatpush1.bf16.msra.mxu0 %v259
    %315 = vmatprep.subr.bf16.mxu0 %v264
    %316 = vmatpush1.bf16.msra.mxu0 %v263
    %317 = vmatprep.subr.bf16.mxu0 %v268
    %318 = vmatpush1.bf16.msra.mxu0 %v267
    %319 = vmatprep.subr.bf16.mxu0 0
    %320 = vmatpush1.bf16.msra.mxu0 0
    %321 = vmatprep.subr.bf16.mxu0 0
    %322 = vmatpush1.bf16.msra.mxu0 0
    %323 = vmatprep.subr.bf16.mxu0 0
    %324 = vmatpush1.bf16.msra.mxu0 0
    %325 = vmatprep.subr.bf16.mxu0 0
    %326 = vmatpush1.bf16.msra.mxu0 0
    %327 = vmatprep.subr.bf16.mxu0 0
    %328 = vmatpush1.bf16.msra.mxu0 0
    %329 = vmatprep.subr.bf16.mxu0 0
    %330 = vmatpush1.bf16.msra.mxu0 0
    %331 = vmatprep.subr.bf16.mxu0 0
    %332 = vmatpush1.bf16.msra.mxu0 0
    %333 = vmatprep.subr.bf16.mxu0 0
    %334 = vmatpush1.bf16.msra.mxu0 0
    %335 = vmatprep.mubr.bf16.mxu0 0
    %336 = vmatmul.mubr.bf16.gmra.mrb[0].mxu0 %v88
    %v337 = vpop.f32.mrb[0].mxu0
    %v338 = vadd.f32 %v126, %v337
    %v339 = vpop.f32.mrb[0].mxu0
    %v340 = vadd.f32 %v130, %v339
    %v341 = vpop.f32.mrb[0].mxu0
    %v342 = vpop.f32.mrb[0].mxu0
    %343 = vdwg.mxu0
    %344 = vmatprep.subr.bf16.mxu0 %v242
    %345 = vmatpush1.bf16.msra.mxu0 %v241
    %346 = vmatprep.subr.bf16.mxu0 %v246
    %347 = vmatpush1.bf16.msra.mxu0 %v245
    %348 = vmatprep.subr.bf16.mxu0 %v250
    %349 = vmatpush1.bf16.msra.mxu0 %v249
    %350 = vmatprep.subr.bf16.mxu0 %v254
    %351 = vmatpush1.bf16.msra.mxu0 %v253
    %352 = vmatprep.subr.bf16.mxu0 %v258
    %353 = vmatpush1.bf16.msra.mxu0 %v257
    %354 = vmatprep.subr.bf16.mxu0 %v262
    %355 = vmatpush1.bf16.msra.mxu0 %v261
    %356 = vmatprep.subr.bf16.mxu0 %v266
    %357 = vmatpush1.bf16.msra.mxu0 %v265
    %358 = vmatprep.subr.bf16.mxu0 %v270
    %359 = vmatpush1.bf16.msra.mxu0 %v269
    %360 = vmatprep.subr.bf16.mxu0 0
    %361 = vmatpush1.bf16.msra.mxu0 0
    %362 = vmatprep.subr.bf16.mxu0 0
    %363 = vmatpush1.bf16.msra.mxu0 0
    %364 = vmatprep.subr.bf16.mxu0 0
    %365 = vmatpush1.bf16.msra.mxu0 0
    %366 = vmatprep.subr.bf16.mxu0 0
    %367 = vmatpush1.bf16.msra.mxu0 0
    %368 = vmatprep.subr.bf16.mxu0 0
    %369 = vmatpush1.bf16.msra.mxu0 0
    %370 = vmatprep.subr.bf16.mxu0 0
    %371 = vmatpush1.bf16.msra.mxu0 0
    %372 = vmatprep.subr.bf16.mxu0 0
    %373 = vmatpush1.bf16.msra.mxu0 0
    %374 = vmatprep.subr.bf16.mxu0 0
    %375 = vmatpush1.bf16.msra.mxu0 0
    %376 = vmatprep.mubr.bf16.mxu0 0
    %377 = vmatmul.mubr.bf16.gmra.mrb[0].mxu0 %v88
    %v378 = vpop.f32.mrb[0].mxu0
    %v379 = vadd.f32 %v134, %v378
    %v380 = vpop.f32.mrb[0].mxu0
    %v381 = vadd.f32 %v138, %v380
    %v382 = vpop.f32.mrb[0].mxu0
    %v383 = vpop.f32.mrb[0].mxu0
    %384 = vdwg.mxu0
    %vm385 = vcmp.gt.f32.partialorder %v338, 0.0
    %vm386 = vcmp.gt.f32.partialorder %v340, 0.0
    %vm387 = vcmp.gt.f32.partialorder %v379, 0.0
    %vm388 = vcmp.gt.f32.partialorder %v381, 0.0
    %v389 = vmul.f32 %v338, 1.442695
    %v390 = vpow.pop %v389
    %v391 = vmul.f32 %v340, 1.442695
    %v392 = vpow.pop %v391
    %v393 = vmul.f32 %v379, 1.442695
    %v394 = vpow.pop %v393
    %v395 = vmul.f32 %v381, 1.442695
    %v396 = vpow.pop %v395
    %v397 = vsub.f32 %v390, 1.0
    %v398 = vsub.f32 %v392, 1.0
    %v399 = vsub.f32 %v394, 1.0
    %v400 = vsub.f32 %v396, 1.0
    %v401 = vmul.f32 %v397, 1.6732632
    %v402 = vmul.f32 %v398, 1.6732632
    %v403 = vmul.f32 %v399, 1.6732632
    %v404 = vmul.f32 %v400, 1.6732632
    %v405 = vsel %vm385, %v338, %v401
    %v406 = vsel %vm386, %v340, %v402
    %v407 = vsel %vm387, %v379, %v403
    %v408 = vsel %vm388, %v381, %v404
    %v409 = vmul.f32 %v405, 1.050701
    %v410 = vmul.f32 %v406, 1.050701
    %v411 = vmul.f32 %v407, 1.050701
    %v412 = vmul.f32 %v408, 1.050701
    %v413 = vpack.c.bf16 %v409, %v409
    %v414 = vpack.c.bf16 %v410, %v410
    %v415 = vpack.c.bf16 %v411, %v411
    %v416 = vpack.c.bf16 %v412, %v412
    %v417 = vld [vmem:[#allocation7] sm:$0xff]
    %v418 = vld [vmem:[#allocation7 + $0x8] sm:$0xff]
    %v419 = vld [vmem:[#allocation7 + $0x10] sm:$0xff]
    %v420 = vld [vmem:[#allocation7 + $0x18] sm:$0xff]
    %v421 = vld [vmem:[#allocation7 + $0x20] sm:$0xff]
    %v422 = vld [vmem:[#allocation7 + $0x28] sm:$0xff]
    %v423 = vld [vmem:[#allocation7 + $0x30] sm:$0xff]
    %v424 = vld [vmem:[#allocation7 + $0x38] sm:$0xff]
    %v425 = vld [vmem:[#allocation7 + $0x40] sm:$0xff]
    %v426 = vld [vmem:[#allocation7 + $0x48] sm:$0xff]
    %v427 = vld [vmem:[#allocation7 + $0x50] sm:$0xff]
    %v428 = vld [vmem:[#allocation7 + $0x58] sm:$0xff]
    %v429 = vld [vmem:[#allocation7 + $0x60] sm:$0xff]
    %v430 = vld [vmem:[#allocation7 + $0x68] sm:$0xff]
    %v431 = vld [vmem:[#allocation7 + $0x70] sm:$0xff]
    %v432 = vld [vmem:[#allocation7 + $0x78] sm:$0xff]
    %v433 = vld [vmem:[#allocation7 + $0x80] sm:$0xff]
    %v434 = vld [vmem:[#allocation7 + $0x88] sm:$0xff]
    %v435 = vld [vmem:[#allocation7 + $0x90] sm:$0xff]
    %v436 = vld [vmem:[#allocation7 + $0x98] sm:$0xff]
    %v437 = vld [vmem:[#allocation7 + $0xa0] sm:$0xff]
    %v438 = vld [vmem:[#allocation7 + $0xa8] sm:$0xff]
    %v439 = vld [vmem:[#allocation7 + $0xb0] sm:$0xff]
    %v440 = vld [vmem:[#allocation7 + $0xb8] sm:$0xff]
    %v441 = vld [vmem:[#allocation7 + $0xc0] sm:$0xff]
    %v442 = vld [vmem:[#allocation7 + $0xc8] sm:$0xff]
    %v443 = vld [vmem:[#allocation7 + $0xd0] sm:$0xff]
    %v444 = vld [vmem:[#allocation7 + $0xd8] sm:$0xff]
    %v445 = vld [vmem:[#allocation7 + $0xe0] sm:$0xff]
    %v446 = vld [vmem:[#allocation7 + $0xe8] sm:$0xff]
    %v447 = vld [vmem:[#allocation7 + $0xf0] sm:$0xff]
    %v448 = vld [vmem:[#allocation7 + $0xf8] sm:$0xff]
    %v449 = vld [vmem:[#allocation7 + $0x100] sm:$0xff]
    %v450 = vld [vmem:[#allocation7 + $0x108] sm:$0xff]
    %v451 = vld [vmem:[#allocation7 + $0x110] sm:$0xff]
    %v452 = vld [vmem:[#allocation7 + $0x118] sm:$0xff]
    %v453 = vld [vmem:[#allocation7 + $0x120] sm:$0xff]
    %v454 = vld [vmem:[#allocation7 + $0x128] sm:$0xff]
    %v455 = vld [vmem:[#allocation7 + $0x130] sm:$0xff]
    %v456 = vld [vmem:[#allocation7 + $0x138] sm:$0xff]
    %v457 = vld [vmem:[#allocation7 + $0x140] sm:$0xff]
    %v458 = vld [vmem:[#allocation7 + $0x148] sm:$0xff]
    %v459 = vld [vmem:[#allocation7 + $0x150] sm:$0xff]
    %v460 = vld [vmem:[#allocation7 + $0x158] sm:$0xff]
    %v461 = vld [vmem:[#allocation7 + $0x160] sm:$0xff]
    %v462 = vld [vmem:[#allocation7 + $0x168] sm:$0xff]
    %v463 = vld [vmem:[#allocation7 + $0x170] sm:$0xff]
    %v464 = vld [vmem:[#allocation7 + $0x178] sm:$0xff]
    %v465 = vld [vmem:[#allocation7 + $0x180] sm:$0xff]
    %v466 = vld [vmem:[#allocation7 + $0x188] sm:$0xff]
    %v467 = vld [vmem:[#allocation7 + $0x190] sm:$0xff]
    %v468 = vld [vmem:[#allocation7 + $0x198] sm:$0xff]
    %v469 = vld [vmem:[#allocation7 + $0x1a0] sm:$0xff]
    %v470 = vld [vmem:[#allocation7 + $0x1a8] sm:$0xff]
    %v471 = vld [vmem:[#allocation7 + $0x1b0] sm:$0xff]
    %v472 = vld [vmem:[#allocation7 + $0x1b8] sm:$0xff]
    %v473 = vld [vmem:[#allocation7 + $0x1c0] sm:$0xff]
    %v474 = vld [vmem:[#allocation7 + $0x1c8] sm:$0xff]
    %v475 = vld [vmem:[#allocation7 + $0x1d0] sm:$0xff]
    %v476 = vld [vmem:[#allocation7 + $0x1d8] sm:$0xff]
    %v477 = vld [vmem:[#allocation7 + $0x1e0] sm:$0xff]
    %v478 = vld [vmem:[#allocation7 + $0x1e8] sm:$0xff]
    %v479 = vld [vmem:[#allocation7 + $0x1f0] sm:$0xff]
    %v480 = vld [vmem:[#allocation7 + $0x1f8] sm:$0xff]
    %v481 = vld [vmem:[%s4] sm:$0x3]
    %v483 = vlaneseq
    %v484 = vshrl.u32 %v483, 7
    %v485 = vsub.s32 0, %v484
    %v486 = vrot.slane %v481, %v485
    %v487 = vlaneseq
    %v488 = vshrl.u32 %v487, 7
    %v489 = vsub.s32 1, %v488
    %v490 = vrot.slane %v481, %v489
    %v557 = vunpack.c.l.b16 %v417
    %v558 = vunpack.c.h.b16 %v417
    %v559 = vunpack.c.l.b16 %v418
    %v560 = vunpack.c.h.b16 %v418
    %v561 = vunpack.c.l.b16 %v419
    %v562 = vunpack.c.h.b16 %v419
    %v563 = vunpack.c.l.b16 %v420
    %v564 = vunpack.c.h.b16 %v420
    %v565 = vunpack.c.l.b16 %v421
    %v566 = vunpack.c.h.b16 %v421
    %v567 = vunpack.c.l.b16 %v422
    %v568 = vunpack.c.h.b16 %v422
    %v569 = vunpack.c.l.b16 %v423
    %v570 = vunpack.c.h.b16 %v423
    %v571 = vunpack.c.l.b16 %v424
    %v572 = vunpack.c.h.b16 %v424
    %v573 = vunpack.c.l.b16 %v425
    %v574 = vunpack.c.h.b16 %v425
    %v575 = vunpack.c.l.b16 %v426
    %v576 = vunpack.c.h.b16 %v426
    %v577 = vunpack.c.l.b16 %v427
    %v578 = vunpack.c.h.b16 %v427
    %v579 = vunpack.c.l.b16 %v428
    %v580 = vunpack.c.h.b16 %v428
    %v581 = vunpack.c.l.b16 %v429
    %v582 = vunpack.c.h.b16 %v429
    %v583 = vunpack.c.l.b16 %v430
    %v584 = vunpack.c.h.b16 %v430
    %v585 = vunpack.c.l.b16 %v431
    %v586 = vunpack.c.h.b16 %v431
    %v587 = vunpack.c.l.b16 %v432
    %v588 = vunpack.c.h.b16 %v432
    %v589 = vunpack.c.l.b16 %v433
    %v590 = vunpack.c.h.b16 %v433
    %v591 = vunpack.c.l.b16 %v434
    %v592 = vunpack.c.h.b16 %v434
    %v593 = vunpack.c.l.b16 %v435
    %v594 = vunpack.c.h.b16 %v435
    %v595 = vunpack.c.l.b16 %v436
    %v596 = vunpack.c.h.b16 %v436
    %v597 = vunpack.c.l.b16 %v437
    %v598 = vunpack.c.h.b16 %v437
    %v599 = vunpack.c.l.b16 %v438
    %v600 = vunpack.c.h.b16 %v438
    %v601 = vunpack.c.l.b16 %v439
    %v602 = vunpack.c.h.b16 %v439
    %v603 = vunpack.c.l.b16 %v440
    %v604 = vunpack.c.h.b16 %v440
    %v605 = vunpack.c.l.b16 %v441
    %v606 = vunpack.c.h.b16 %v441
    %v607 = vunpack.c.l.b16 %v442
    %v608 = vunpack.c.h.b16 %v442
    %v609 = vunpack.c.l.b16 %v443
    %v610 = vunpack.c.h.b16 %v443
    %v611 = vunpack.c.l.b16 %v444
    %v612 = vunpack.c.h.b16 %v444
    %v613 = vunpack.c.l.b16 %v445
    %v614 = vunpack.c.h.b16 %v445
    %v615 = vunpack.c.l.b16 %v446
    %v616 = vunpack.c.h.b16 %v446
    %v617 = vunpack.c.l.b16 %v447
    %v618 = vunpack.c.h.b16 %v447
    %v619 = vunpack.c.l.b16 %v448
    %v620 = vunpack.c.h.b16 %v448
    %v621 = vunpack.c.l.b16 %v449
    %v622 = vunpack.c.h.b16 %v449
    %v623 = vunpack.c.l.b16 %v450
    %v624 = vunpack.c.h.b16 %v450
    %v625 = vunpack.c.l.b16 %v451
    %v626 = vunpack.c.h.b16 %v451
    %v627 = vunpack.c.l.b16 %v452
    %v628 = vunpack.c.h.b16 %v452
    %v629 = vunpack.c.l.b16 %v453
    %v630 = vunpack.c.h.b16 %v453
    %v631 = vunpack.c.l.b16 %v454
    %v632 = vunpack.c.h.b16 %v454
    %v633 = vunpack.c.l.b16 %v455
    %v634 = vunpack.c.h.b16 %v455
    %v635 = vunpack.c.l.b16 %v456
    %v636 = vunpack.c.h.b16 %v456
    %v637 = vunpack.c.l.b16 %v457
    %v638 = vunpack.c.h.b16 %v457
    %v639 = vunpack.c.l.b16 %v458
    %v640 = vunpack.c.h.b16 %v458
    %v641 = vunpack.c.l.b16 %v459
    %v642 = vunpack.c.h.b16 %v459
    %v643 = vunpack.c.l.b16 %v460
    %v644 = vunpack.c.h.b16 %v460
    %v645 = vunpack.c.l.b16 %v461
    %v646 = vunpack.c.h.b16 %v461
    %v647 = vunpack.c.l.b16 %v462
    %v648 = vunpack.c.h.b16 %v462
    %v649 = vunpack.c.l.b16 %v463
    %v650 = vunpack.c.h.b16 %v463
    %v651 = vunpack.c.l.b16 %v464
    %v652 = vunpack.c.h.b16 %v464
    %v653 = vunpack.c.l.b16 %v465
    %v654 = vunpack.c.h.b16 %v465
    %v655 = vunpack.c.l.b16 %v466
    %v656 = vunpack.c.h.b16 %v466
    %v657 = vunpack.c.l.b16 %v467
    %v658 = vunpack.c.h.b16 %v467
    %v659 = vunpack.c.l.b16 %v468
    %v660 = vunpack.c.h.b16 %v468
    %v661 = vunpack.c.l.b16 %v469
    %v662 = vunpack.c.h.b16 %v469
    %v663 = vunpack.c.l.b16 %v470
    %v664 = vunpack.c.h.b16 %v470
    %v665 = vunpack.c.l.b16 %v471
    %v666 = vunpack.c.h.b16 %v471
    %v667 = vunpack.c.l.b16 %v472
    %v668 = vunpack.c.h.b16 %v472
    %v669 = vunpack.c.l.b16 %v473
    %v670 = vunpack.c.h.b16 %v473
    %v671 = vunpack.c.l.b16 %v474
    %v672 = vunpack.c.h.b16 %v474
    %v673 = vunpack.c.l.b16 %v475
    %v674 = vunpack.c.h.b16 %v475
    %v675 = vunpack.c.l.b16 %v476
    %v676 = vunpack.c.h.b16 %v476
    %v677 = vunpack.c.l.b16 %v477
    %v678 = vunpack.c.h.b16 %v477
    %v679 = vunpack.c.l.b16 %v478
    %v680 = vunpack.c.h.b16 %v478
    %v681 = vunpack.c.l.b16 %v479
    %v682 = vunpack.c.h.b16 %v479
    %v683 = vunpack.c.l.b16 %v480
    %v684 = vunpack.c.h.b16 %v480
    %v685 = vpack.c.b16 %v559, %v557
    %v686 = vpack.c.b16 %v560, %v558
    %v687 = vpack.c.b16 %v563, %v561
    %v688 = vpack.c.b16 %v564, %v562
    %v689 = vpack.c.b16 %v567, %v565
    %v690 = vpack.c.b16 %v568, %v566
    %v691 = vpack.c.b16 %v571, %v569
    %v692 = vpack.c.b16 %v572, %v570
    %v693 = vpack.c.b16 %v575, %v573
    %v694 = vpack.c.b16 %v576, %v574
    %v695 = vpack.c.b16 %v579, %v577
    %v696 = vpack.c.b16 %v580, %v578
    %v697 = vpack.c.b16 %v583, %v581
    %v698 = vpack.c.b16 %v584, %v582
    %v699 = vpack.c.b16 %v587, %v585
    %v700 = vpack.c.b16 %v588, %v586
    %v701 = vpack.c.b16 %v591, %v589
    %v702 = vpack.c.b16 %v592, %v590
    %v703 = vpack.c.b16 %v595, %v593
    %v704 = vpack.c.b16 %v596, %v594
    %v705 = vpack.c.b16 %v599, %v597
    %v706 = vpack.c.b16 %v600, %v598
    %v707 = vpack.c.b16 %v603, %v601
    %v708 = vpack.c.b16 %v604, %v602
    %v709 = vpack.c.b16 %v607, %v605
    %v710 = vpack.c.b16 %v608, %v606
    %v711 = vpack.c.b16 %v611, %v609
    %v712 = vpack.c.b16 %v612, %v610
    %v713 = vpack.c.b16 %v615, %v613
    %v714 = vpack.c.b16 %v616, %v614
    %v715 = vpack.c.b16 %v619, %v617
    %v716 = vpack.c.b16 %v620, %v618
    %v717 = vpack.c.b16 %v623, %v621
    %v718 = vpack.c.b16 %v624, %v622
    %v719 = vpack.c.b16 %v627, %v625
    %v720 = vpack.c.b16 %v628, %v626
    %v721 = vpack.c.b16 %v631, %v629
    %v722 = vpack.c.b16 %v632, %v630
    %v723 = vpack.c.b16 %v635, %v633
    %v724 = vpack.c.b16 %v636, %v634
    %v725 = vpack.c.b16 %v639, %v637
    %v726 = vpack.c.b16 %v640, %v638
    %v727 = vpack.c.b16 %v643, %v641
    %v728 = vpack.c.b16 %v644, %v642
    %v729 = vpack.c.b16 %v647, %v645
    %v730 = vpack.c.b16 %v648, %v646
    %v731 = vpack.c.b16 %v651, %v649
    %v732 = vpack.c.b16 %v652, %v650
    %v733 = vpack.c.b16 %v655, %v653
    %v734 = vpack.c.b16 %v656, %v654
    %v735 = vpack.c.b16 %v659, %v657
    %v736 = vpack.c.b16 %v660, %v658
    %v737 = vpack.c.b16 %v663, %v661
    %v738 = vpack.c.b16 %v664, %v662
    %v739 = vpack.c.b16 %v667, %v665
    %v740 = vpack.c.b16 %v668, %v666
    %v741 = vpack.c.b16 %v671, %v669
    %v742 = vpack.c.b16 %v672, %v670
    %v743 = vpack.c.b16 %v675, %v673
    %v744 = vpack.c.b16 %v676, %v674
    %v745 = vpack.c.b16 %v679, %v677
    %v746 = vpack.c.b16 %v680, %v678
    %v747 = vpack.c.b16 %v683, %v681
    %v748 = vpack.c.b16 %v684, %v682
    %813 = vmatprep.subr.bf16.mxu0 %v686
    %814 = vmatpush1.bf16.msra.mxu0 %v685
    %815 = vmatprep.subr.bf16.mxu0 %v688
    %816 = vmatpush1.bf16.msra.mxu0 %v687
    %817 = vmatprep.subr.bf16.mxu0 %v690
    %818 = vmatpush1.bf16.msra.mxu0 %v689
    %819 = vmatprep.subr.bf16.mxu0 %v692
    %820 = vmatpush1.bf16.msra.mxu0 %v691
    %821 = vmatprep.subr.bf16.mxu0 %v694
    %822 = vmatpush1.bf16.msra.mxu0 %v693
    %823 = vmatprep.subr.bf16.mxu0 %v696
    %824 = vmatpush1.bf16.msra.mxu0 %v695
    %825 = vmatprep.subr.bf16.mxu0 %v698
    %826 = vmatpush1.bf16.msra.mxu0 %v697
    %827 = vmatprep.subr.bf16.mxu0 %v700
    %828 = vmatpush1.bf16.msra.mxu0 %v699
    %829 = vmatprep.subr.bf16.mxu0 %v702
    %830 = vmatpush1.bf16.msra.mxu0 %v701
    %831 = vmatprep.subr.bf16.mxu0 %v704
    %832 = vmatpush1.bf16.msra.mxu0 %v703
    %833 = vmatprep.subr.bf16.mxu0 %v706
    %834 = vmatpush1.bf16.msra.mxu0 %v705
    %835 = vmatprep.subr.bf16.mxu0 %v708
    %836 = vmatpush1.bf16.msra.mxu0 %v707
    %837 = vmatprep.subr.bf16.mxu0 %v710
    %838 = vmatpush1.bf16.msra.mxu0 %v709
    %839 = vmatprep.subr.bf16.mxu0 %v712
    %840 = vmatpush1.bf16.msra.mxu0 %v711
    %841 = vmatprep.subr.bf16.mxu0 %v714
    %842 = vmatpush1.bf16.msra.mxu0 %v713
    %843 = vmatprep.subr.bf16.mxu0 %v716
    %844 = vmatpush1.bf16.msra.mxu0 %v715
    %845 = vmatprep.mubr.bf16.mxu0 %v414
    %846 = vmatmul.mubr.bf16.gmra.mrb[0].mxu0 %v413
    %v847 = vpop.f32.mrb[0].mxu0
    %v848 = vadd.f32 %v486, %v847
    %v849 = vpop.f32.mrb[0].mxu0
    %v850 = vadd.f32 %v490, %v849
    %v851 = vpop.f32.mrb[0].mxu0
    %v852 = vpop.f32.mrb[0].mxu0
    %853 = vdwg.mxu0
    %854 = vmatprep.subr.bf16.mxu0 %v718
    %855 = vmatpush1.bf16.msra.mxu0 %v717
    %856 = vmatprep.subr.bf16.mxu0 %v720
    %857 = vmatpush1.bf16.msra.mxu0 %v719
    %858 = vmatprep.subr.bf16.mxu0 %v722
    %859 = vmatpush1.bf16.msra.mxu0 %v721
    %860 = vmatprep.subr.bf16.mxu0 %v724
    %861 = vmatpush1.bf16.msra.mxu0 %v723
    %862 = vmatprep.subr.bf16.mxu0 %v726
    %863 = vmatpush1.bf16.msra.mxu0 %v725
    %864 = vmatprep.subr.bf16.mxu0 %v728
    %865 = vmatpush1.bf16.msra.mxu0 %v727
    %866 = vmatprep.subr.bf16.mxu0 %v730
    %867 = vmatpush1.bf16.msra.mxu0 %v729
    %868 = vmatprep.subr.bf16.mxu0 %v732
    %869 = vmatpush1.bf16.msra.mxu0 %v731
    %870 = vmatprep.subr.bf16.mxu0 %v734
    %871 = vmatpush1.bf16.msra.mxu0 %v733
    %872 = vmatprep.subr.bf16.mxu0 %v736
    %873 = vmatpush1.bf16.msra.mxu0 %v735
    %874 = vmatprep.subr.bf16.mxu0 %v738
    %875 = vmatpush1.bf16.msra.mxu0 %v737
    %876 = vmatprep.subr.bf16.mxu0 %v740
    %877 = vmatpush1.bf16.msra.mxu0 %v739
    %878 = vmatprep.subr.bf16.mxu0 %v742
    %879 = vmatpush1.bf16.msra.mxu0 %v741
    %880 = vmatprep.subr.bf16.mxu0 %v744
    %881 = vmatpush1.bf16.msra.mxu0 %v743
    %882 = vmatprep.subr.bf16.mxu0 %v746
    %883 = vmatpush1.bf16.msra.mxu0 %v745
    %884 = vmatprep.subr.bf16.mxu0 %v748
    %885 = vmatpush1.bf16.msra.mxu0 %v747
    %886 = vmatprep.mubr.bf16.mxu0 %v416
    %887 = vmatmul.mubr.bf16.gmra.mrb[0].mxu0 %v415
    %v888 = vpop.f32.mrb[0].mxu0
    %v889 = vadd.f32 %v848, %v888
    %v890 = vpop.f32.mrb[0].mxu0
    %v891 = vadd.f32 %v850, %v890
    %v892 = vpop.f32.mrb[0].mxu0
    %v893 = vpop.f32.mrb[0].mxu0
    %894 = vdwg.mxu0
    %vm895 = vcmp.gt.f32.partialorder %v889, 0.0
    %vm896 = vcmp.gt.f32.partialorder %v891, 0.0
    %v897 = vmul.f32 %v889, 1.442695
    %v898 = vpow.pop %v897
    %v899 = vmul.f32 %v891, 1.442695
    %v900 = vpow.pop %v899
    %v901 = vsub.f32 %v898, 1.0
    %v902 = vsub.f32 %v900, 1.0
    %v903 = vmul.f32 %v901, 1.6732632
    %v904 = vmul.f32 %v902, 1.6732632
    %v905 = vsel %vm895, %v889, %v903
    %v906 = vsel %vm896, %v891, %v904
    %v907 = vmul.f32 %v905, 1.050701
    %v908 = vmul.f32 %v906, 1.050701
    %v909 = vpack.c.bf16 %v907, %v907
    %v910 = vpack.c.bf16 %v908, %v908
    %v911 = vld [vmem:[#allocation8] sm:$0xf]
    %v912 = vld [vmem:[#allocation8 + $0x4] sm:$0xf]
    %v913 = vld [vmem:[#allocation8 + $0x8] sm:$0xf]
    %v914 = vld [vmem:[#allocation8 + $0xc] sm:$0xf]
    %v915 = vld [vmem:[#allocation8 + $0x10] sm:$0xf]
    %v916 = vld [vmem:[#allocation8 + $0x14] sm:$0xf]
    %v917 = vld [vmem:[#allocation8 + $0x18] sm:$0xf]
    %v918 = vld [vmem:[#allocation8 + $0x1c] sm:$0xf]
    %v919 = vld [vmem:[#allocation8 + $0x20] sm:$0xf]
    %v920 = vld [vmem:[#allocation8 + $0x24] sm:$0xf]
    %v921 = vld [vmem:[#allocation8 + $0x28] sm:$0xf]
    %v922 = vld [vmem:[#allocation8 + $0x2c] sm:$0xf]
    %v923 = vld [vmem:[#allocation8 + $0x30] sm:$0xf]
    %v924 = vld [vmem:[#allocation8 + $0x34] sm:$0xf]
    %v925 = vld [vmem:[#allocation8 + $0x38] sm:$0xf]
    %v926 = vld [vmem:[#allocation8 + $0x3c] sm:$0xf]
    %v927 = vld [vmem:[#allocation8 + $0x40] sm:$0xf]
    %v928 = vld [vmem:[#allocation8 + $0x44] sm:$0xf]
    %v929 = vld [vmem:[#allocation8 + $0x48] sm:$0xf]
    %v930 = vld [vmem:[#allocation8 + $0x4c] sm:$0xf]
    %v931 = vld [vmem:[#allocation8 + $0x50] sm:$0xf]
    %v932 = vld [vmem:[#allocation8 + $0x54] sm:$0xf]
    %v933 = vld [vmem:[#allocation8 + $0x58] sm:$0xf]
    %v934 = vld [vmem:[#allocation8 + $0x5c] sm:$0xf]
    %v935 = vld [vmem:[#allocation8 + $0x60] sm:$0xf]
    %v936 = vld [vmem:[#allocation8 + $0x64] sm:$0xf]
    %v937 = vld [vmem:[#allocation8 + $0x68] sm:$0xf]
    %v938 = vld [vmem:[#allocation8 + $0x6c] sm:$0xf]
    %v939 = vld [vmem:[#allocation8 + $0x70] sm:$0xf]
    %v940 = vld [vmem:[#allocation8 + $0x74] sm:$0xf]
    %v941 = vld [vmem:[#allocation8 + $0x78] sm:$0xf]
    %v942 = vld [vmem:[#allocation8 + $0x7c] sm:$0xf]
    %v943 = vld [vmem:[%s6] sm:$0x1]
    %v945 = vlaneseq
    %v946 = vshrl.u32 %v945, 7
    %v947 = vsub.s32 0, %v946
    %v948 = vrot.slane %v943, %v947
    %v982 = vunpack.c.l.b16 %v911
    %v983 = vunpack.c.l.b16 %v912
    %v984 = vunpack.c.l.b16 %v913
    %v985 = vunpack.c.l.b16 %v914
    %v986 = vunpack.c.l.b16 %v915
    %v987 = vunpack.c.l.b16 %v916
    %v988 = vunpack.c.l.b16 %v917
    %v989 = vunpack.c.l.b16 %v918
    %v990 = vunpack.c.l.b16 %v919
    %v991 = vunpack.c.l.b16 %v920
    %v992 = vunpack.c.l.b16 %v921
    %v993 = vunpack.c.l.b16 %v922
    %v994 = vunpack.c.l.b16 %v923
    %v995 = vunpack.c.l.b16 %v924
    %v996 = vunpack.c.l.b16 %v925
    %v997 = vunpack.c.l.b16 %v926
    %v998 = vunpack.c.l.b16 %v927
    %v999 = vunpack.c.l.b16 %v928
    %v1000 = vunpack.c.l.b16 %v929
    %v1001 = vunpack.c.l.b16 %v930
    %v1002 = vunpack.c.l.b16 %v931
    %v1003 = vunpack.c.l.b16 %v932
    %v1004 = vunpack.c.l.b16 %v933
    %v1005 = vunpack.c.l.b16 %v934
    %v1006 = vunpack.c.l.b16 %v935
    %v1007 = vunpack.c.l.b16 %v936
    %v1008 = vunpack.c.l.b16 %v937
    %v1009 = vunpack.c.l.b16 %v938
    %v1010 = vunpack.c.l.b16 %v939
    %v1011 = vunpack.c.l.b16 %v940
    %v1012 = vunpack.c.l.b16 %v941
    %v1013 = vunpack.c.l.b16 %v942
    %v1014 = vpack.c.b16 %v983, %v982
    %v1015 = vpack.c.b16 %v985, %v984
    %v1016 = vpack.c.b16 %v987, %v986
    %v1017 = vpack.c.b16 %v989, %v988
    %v1018 = vpack.c.b16 %v991, %v990
    %v1019 = vpack.c.b16 %v993, %v992
    %v1020 = vpack.c.b16 %v995, %v994
    %v1021 = vpack.c.b16 %v997, %v996
    %v1022 = vpack.c.b16 %v999, %v998
    %v1023 = vpack.c.b16 %v1001, %v1000
    %v1024 = vpack.c.b16 %v1003, %v1002
    %v1025 = vpack.c.b16 %v1005, %v1004
    %v1026 = vpack.c.b16 %v1007, %v1006
    %v1027 = vpack.c.b16 %v1009, %v1008
    %v1028 = vpack.c.b16 %v1011, %v1010
    %v1029 = vpack.c.b16 %v1013, %v1012
    %1046 = vmatprep.subr.bf16.mxu0 0
    %1047 = vmatpush1.bf16.msra.mxu0 %v1014
    %1048 = vmatprep.subr.bf16.mxu0 0
    %1049 = vmatpush1.bf16.msra.mxu0 %v1015
    %1050 = vmatprep.subr.bf16.mxu0 0
    %1051 = vmatpush1.bf16.msra.mxu0 %v1016
    %1052 = vmatprep.subr.bf16.mxu0 0
    %1053 = vmatpush1.bf16.msra.mxu0 %v1017
    %1054 = vmatprep.subr.bf16.mxu0 0
    %1055 = vmatpush1.bf16.msra.mxu0 %v1018
    %1056 = vmatprep.subr.bf16.mxu0 0
    %1057 = vmatpush1.bf16.msra.mxu0 %v1019
    %1058 = vmatprep.subr.bf16.mxu0 0
    %1059 = vmatpush1.bf16.msra.mxu0 %v1020
    %1060 = vmatprep.subr.bf16.mxu0 0
    %1061 = vmatpush1.bf16.msra.mxu0 %v1021
    %1062 = vmatprep.subr.bf16.mxu0 0
    %1063 = vmatpush1.bf16.msra.mxu0 %v1022
    %1064 = vmatprep.subr.bf16.mxu0 0
    %1065 = vmatpush1.bf16.msra.mxu0 %v1023
    %1066 = vmatprep.subr.bf16.mxu0 0
    %1067 = vmatpush1.bf16.msra.mxu0 %v1024
    %1068 = vmatprep.subr.bf16.mxu0 0
    %1069 = vmatpush1.bf16.msra.mxu0 %v1025
    %1070 = vmatprep.subr.bf16.mxu0 0
    %1071 = vmatpush1.bf16.msra.mxu0 %v1026
    %1072 = vmatprep.subr.bf16.mxu0 0
    %1073 = vmatpush1.bf16.msra.mxu0 %v1027
    %1074 = vmatprep.subr.bf16.mxu0 0
    %1075 = vmatpush1.bf16.msra.mxu0 %v1028
    %1076 = vmatprep.subr.bf16.mxu0 0
    %1077 = vmatpush1.bf16.msra.mxu0 %v1029
    %1078 = vmatprep.mubr.bf16.mxu0 %v910
    %1079 = vmatmul.mubr.bf16.gmra.mrb[0].mxu0 %v909
    %v1080 = vpop.f32.mrb[0].mxu0
    %v1081 = vadd.f32 %v948, %v1080
    %v1082 = vpop.f32.mrb[0].mxu0
    %v1083 = vpop.f32.mrb[0].mxu0
    %v1084 = vpop.f32.mrb[0].mxu0
    %1085 = vdwg.mxu0
    %vm1086 = vcmp.gt.f32.partialorder %v1081, 0.0
    %v1087 = vmul.f32 %v1081, 1.442695
    %v1088 = vpow.pop %v1087
    %v1089 = vsub.f32 %v1088, 1.0
    %v1090 = vmul.f32 %v1089, 1.6732632
    %v1091 = vsel %vm1086, %v1081, %v1090
    %v1092 = vmul.f32 %v1091, 1.050701
    %v1093 = vld [vmem:[%s7] sm:$0x1]
    %v1095 = vlaneseq
    %v1096 = vshrl.u32 %v1095, 7
    %v1097 = vsub.s32 0, %v1096
    %v1098 = vrot.slane %v1093, %v1097
    %v1100 = vmul.f32 %v1092, %v1098
    %1101 = vadd.xlane.f32.xlu0 %v1100
    %v1102 = vpop.xlane.xlu0 %1101
    %v1103 = vld [vmem:[#allocation2] sm:$0x1]
    %v1105 = vlaneseq
    %v1106 = vshrl.u32 %v1105, 7
    %v1107 = vsub.s32 0, %v1106
    %v1108 = vrot.slane %v1103, %v1107
    %v1110 = vadd.f32 %v1102, %v1108
    %vm1111 = vcmask 7168
    %1112 = vst.msk [vmem:[%s9] sm:$0xff] %vm1111, %v1110
    // Predicated region
    $region54: #{tpu_custom_call.1} parent=1 // pred_check
      _
    $region55: #{tpu_custom_call.1} parent=1 // pred_check_branch
      %1114 = sbr.rel (0) target = $region57
    $region56: #{tpu_custom_call.1} parent=1 // pred_region
      _
    $region57: #{tpu_custom_call.1} parent=1 // pred_fallthru
      _
    // Predicated region
    $region58: #{tpu_custom_call.1} parent=1 // pred_check
      _
    $region59: #{tpu_custom_call.1} parent=1 // pred_check_branch
      %1116 = sbr.rel (0) target = $region61
    $region60: #{tpu_custom_call.1} parent=1 // pred_region
      _
    $region61: #{tpu_custom_call.1} parent=1 // pred_fallthru
      _
    %1117 = vsyncpa [#allocation4], 1
    %1118 = vsyncpa [#allocation6], 1
    %1119 = vsyncpa [#allocation9], 1

</llo_original>
